<compile_context>
chip_gen: v7x
topology: tpu7x:2x2x1
jax: 0.10.0
libtpu: 0.0.40
codegen_flags: <defaults>
</compile_context>

<pallas_src>
import jax
import jax.numpy as jnp
from jax.experimental import pallas as pl
from jax.experimental.pallas import tpu as pltpu


_N_INFLIGHT = 8  # outstanding row DMAs in the HBM-gather path (8-16 is a good range)


def _round_up(x: int, m: int) -> int:
    return ((x + m - 1) // m) * m


# ----------------------------------------------------------------------------
# Path 1: table resident in VMEM, gather via one-hot matmul on the MXU.
# ----------------------------------------------------------------------------
def _onehot_gather_kernel(ids_ref, w_ref, out_ref):
    # ids_ref: (T, 1) int32 VMEM block of token ids for this tile.
    # w_ref:   (V, D) weight table, same block every grid step (stays resident).
    # out_ref: (T, D) output tile.
    t = out_ref.shape[0]
    v = w_ref.shape[0]
    ids = ids_ref[...]                                         # (T, 1) int32
    cols = jax.lax.broadcasted_iota(jnp.int32, (t, v), 1)      # (T, V)
    onehot = (ids == cols).astype(w_ref.dtype)                 # exact 0/1 rows
    out_ref[...] = jnp.dot(
        onehot, w_ref[...], preferred_element_type=jnp.float32
    ).astype(out_ref.dtype)


# ----------------------------------------------------------------------------
# Path 2: table in HBM, manual multi-outstanding row-DMA gather.
# ----------------------------------------------------------------------------
def _dma_gather_kernel(ids_ref, w_hbm_ref, out_ref, sems):
    # ids_ref:   SMEM scalar-prefetch ref holding ALL (padded) token ids.
    # w_hbm_ref: full weight table left in HBM (memory_space=pl.ANY).
    # out_ref:   (T, D) VMEM output tile; each gathered row is DMA'd into it.
    # sems:      (_N_INFLIGHT,) DMA semaphores, used as a rotating window.
    t = out_ref.shape[0]
    base = pl.program_id(0) * t

    def start(j):
        tok = ids_ref[base + j]
        pltpu.make_async_copy(
            w_hbm_ref.at[tok], out_ref.at[j], sems.at[j % _N_INFLIGHT]
        ).start()

    def wait(j):
        # Row 0 has the same shape as any gathered row; only shapes matter for wait.
        pltpu.make_async_copy(
            w_hbm_ref.at[0], out_ref.at[j], sems.at[j % _N_INFLIGHT]
        ).wait()

    # Prime the window (static unrolled).
    for j in range(min(_N_INFLIGHT, t)):
        start(j)

    def body(j, carry):
        wait(j)

        @pl.when(j + _N_INFLIGHT < t)
        def _():
            start(j + _N_INFLIGHT)

        return carry

    jax.lax.fori_loop(0, t, body, 0)


# ----------------------------------------------------------------------------
# Wrapper
# ----------------------------------------------------------------------------
def embedding_lookup(
    token_ids: jax.Array,
    weight: jax.Array,
    *,
    max_tokens_per_tile: int = 512,
    vmem_table_bytes: int = 4 * 1024 * 1024,
    force_hbm_gather: bool = False,
) -> jax.Array:
    """Pallas equivalent of torch Embedding.forward: weight[token_ids]."""
    orig_shape = token_ids.shape
    num_embeddings, embedding_dim = weight.shape
    itemsize = jnp.dtype(weight.dtype).itemsize

    # Clamp ids so a bad id cannot drive an out-of-bounds DMA / block index.
    flat_ids = jnp.clip(
        token_ids.reshape(-1).astype(jnp.int32), 0, num_embeddings - 1
    )
    n_tokens = flat_ids.shape[0]

    # Tokens per grid step: as large as possible while keeping the
    # double-buffered (T, D) output tiles under ~6 MiB (safe under v5e's
    # 16 MiB default scoped VMEM; comfortably under v6e/v7x limits).
    tile_budget = 6 * 1024 * 1024
    t_mem = max(8, tile_budget // (2 * embedding_dim * itemsize))
    t = min(max_tokens_per_tile, t_mem, _round_up(n_tokens, 8))
    t = max(8, (t // 8) * 8)

    n_pad = _round_up(n_tokens, t)
    if n_pad != n_tokens:
        flat_ids = jnp.pad(flat_ids, (0, n_pad - n_tokens))  # pad id 0 (valid, sliced off)
    n_tiles = n_pad // t

    table_bytes = num_embeddings * embedding_dim * itemsize
    use_resident_table = (table_bytes <= vmem_table_bytes) and not force_hbm_gather

    compiler_params = pltpu.CompilerParams(
        # Token tiles are independent -> shard across both TensorCores on v7x.
        dimension_semantics=("parallel",),
        vmem_limit_bytes=32 * 1024 * 1024,
    )

    if use_resident_table:
        # Small-vocab fast path: table stays resident in VMEM, gather = MXU matmul.
        ids2d = flat_ids.reshape(n_pad, 1)
        grid_spec = pltpu.PrefetchScalarGridSpec(
            num_scalar_prefetch=0,
            grid=(n_tiles,),
            in_specs=[
                pl.BlockSpec((t, 1), lambda i: (i, 0)),                    # ids tile
                pl.BlockSpec((num_embeddings, embedding_dim),
                             lambda i: (0, 0)),                            # resident table
            ],
            out_specs=pl.BlockSpec((t, embedding_dim), lambda i: (i, 0)),
        )
        out_flat = pl.pallas_call(
            _onehot_gather_kernel,
            grid_spec=grid_spec,
            out_shape=jax.ShapeDtypeStruct((n_pad, embedding_dim), weight.dtype),
            compiler_params=compiler_params,
        )(ids2d, weight)
    else:
        # Large-vocab path: manual HBM row gather with _N_INFLIGHT DMAs outstanding.
        # TODO(synk): for extremely long id sequences (>~100K tokens) the scalar-
        # prefetch id array should be chunked to stay within SMEM capacity.
        grid_spec = pltpu.PrefetchScalarGridSpec(
            num_scalar_prefetch=1,
            grid=(n_tiles,),
            in_specs=[pl.BlockSpec(memory_space=pl.ANY)],                  # weight in HBM
            out_specs=pl.BlockSpec((t, embedding_dim), lambda i, ids: (i, 0)),
            scratch_shapes=[pltpu.SemaphoreType.DMA((_N_INFLIGHT,))],
        )
        out_flat = pl.pallas_call(
            _dma_gather_kernel,
            grid_spec=grid_spec,
            out_shape=jax.ShapeDtypeStruct((n_pad, embedding_dim), weight.dtype),
            compiler_params=compiler_params,
        )(flat_ids, weight)

    if n_pad != n_tokens:
        out_flat = out_flat[:n_tokens]
    return out_flat.reshape(*orig_shape, embedding_dim)


if __name__ == "__main__":
    key = jax.random.PRNGKey(0)
    k_w, k_ids, k_ids2 = jax.random.split(key, 3)

    num_embeddings = 32
    embedding_dim = 128
    batch, seq = 2, 8

    # Deterministic init matching nn.init.trunc_normal_(mean=0, std=1, a=-3, b=3).
    weight = jax.random.truncated_normal(
        k_w, -3.0, 3.0, (num_embeddings, embedding_dim), dtype=jnp.float32
    )
    token_ids = jax.random.randint(
        k_ids, (batch, seq), minval=0, maxval=num_embeddings, dtype=jnp.int32
    )
    ref = weight[token_ids]

    # Path 1: small table resident in VMEM (one-hot @ table on the MXU).
    out = jax.block_until_ready(embedding_lookup(token_ids, weight))
    assert out.shape == (batch, seq, embedding_dim), out.shape
    assert out.dtype == weight.dtype
    assert jnp.allclose(out, ref), "resident-table path mismatch vs reference gather"

    # Path 2: force the HBM manual-DMA gather path (used for large vocabularies).
    out_dma = jax.block_until_ready(
        embedding_lookup(token_ids, weight, force_hbm_gather=True)
    )
    assert jnp.allclose(out_dma, ref), "HBM DMA-gather path mismatch vs reference gather"

    # Ragged token count (exercises padding + slicing).
    token_ids2 = jax.random.randint(
        k_ids2, (3, 5), minval=0, maxval=num_embeddings, dtype=jnp.int32
    )
    out2 = jax.block_until_ready(embedding_lookup(token_ids2, weight))
    assert out2.shape == (3, 5, embedding_dim)
    assert jnp.allclose(out2, weight[token_ids2]), "ragged-N path mismatch"

    print("KERNEL_OK")
</pallas_src>

<mosaic_0001>
module attributes {stable_mosaic.version = 11 : i64} {
  func.func @_onehot_gather_kernel(%arg0: i32, %arg1: memref<16x1xi32, #tpu.memory_space<vmem>>, %arg2: memref<32x128xf32, #tpu.memory_space<vmem>>, %arg3: memref<16x128xf32, #tpu.memory_space<vmem>>) attributes {dimension_semantics = [#tpu.dimension_semantics<parallel>], iteration_bounds = array<i64: 1>, scalar_prefetch = 0 : i64, scratch_operands = 0 : i64, tpu.core_type = #tpu.core_type<tc>, window_params = [{transform_indices = @transform_0, window_bounds = array<i64: 16, 1>}, {pipeline_mode = #tpu.pipeline_mode<synchronous>, transform_indices = @transform_1, window_bounds = array<i64: 32, 128>}, {transform_indices = @transform_2, window_bounds = array<i64: 16, 128>}]} {
    %c0 = arith.constant 0 : index
    %c0_0 = arith.constant 0 : index
    %0 = vector.load %arg1[%c0, %c0_0] : memref<16x1xi32, #tpu.memory_space<vmem>>, vector<16x1xi32>
    %1 = tpu.iota {dimensions = array<i32: 1>} : vector<16x32xi32>
    %2 = vector.broadcast %0 : vector<16x1xi32> to vector<16x32xi32>
    %3 = arith.cmpi eq, %2, %1 : vector<16x32xi32>
    %4 = arith.extui %3 : vector<16x32xi1> to vector<16x32xi32>
    %5 = arith.sitofp %4 : vector<16x32xi32> to vector<16x32xf32>
    %c0_1 = arith.constant 0 : index
    %c0_2 = arith.constant 0 : index
    %6 = vector.load %arg2[%c0_1, %c0_2] : memref<32x128xf32, #tpu.memory_space<vmem>>, vector<32x128xf32>
    %cst = arith.constant dense<0.000000e+00> : vector<16x128xf32>
    %7 = tpu.matmul %5, %6, %cst {dimension_numbers = #tpu.dot_dimension_numbers<[1], [0], [0], [1], [0, 0, 1, 1], [], []>} : vector<16x32xf32>, vector<32x128xf32>, vector<16x128xf32> -> vector<16x128xf32>
    %c0_3 = arith.constant 0 : index
    %c0_4 = arith.constant 0 : index
    %8 = vector.load %arg3[%c0_3, %c0_4] : memref<16x128xf32, #tpu.memory_space<vmem>>, vector<16x128xf32>
    tpu.vector_store %arg3[%c0_3, %c0_4], %7 {strides = array<i32>} : memref<16x128xf32, #tpu.memory_space<vmem>>, vector<16x128xf32>,
    return
  }
  func.func @transform_0(%arg0: i32) -> (i32, i32) {
    %c0_i32 = arith.constant 0 : i32
    %c0_i32_0 = arith.constant 0 : i32
    return %arg0, %c0_i32 : i32, i32
  }
  func.func @transform_1(%arg0: i32) -> (i32, i32) {
    %c0_i32 = arith.constant 0 : i32
    %c0_i32_0 = arith.constant 0 : i32
    %c0_i32_1 = arith.constant 0 : i32
    return %c0_i32, %c0_i32_0 : i32, i32
  }
  func.func @transform_2(%arg0: i32) -> (i32, i32) {
    %c0_i32 = arith.constant 0 : i32
    %c0_i32_0 = arith.constant 0 : i32
    return %arg0, %c0_i32 : i32, i32
  }
}

</mosaic_0001>

<llo_original>
// kernel: tpu_custom_call.1
$region0: #{tpu_custom_call.1}
  #allocation0 [shape = 'u32[]', space=smem, size = 0x4, offset = 0x4, fixed_abs, tag = 'smem constant byte address 0x4 - core index']
  #allocation1 [shape = 'u32[144,128]{1,0:T(1,128)}', space=vmem, size = 0x12000, scoped, tag = 'internal scratch']
  %s0 = inlined_call_operand.vmem [shape: s32[16,1], index: 0, kind: input, shape index: {}]
  %s1 = inlined_call_operand.hbm [shape: f32[32,128], index: 1, kind: input, shape index: {}]
  %s2 = inlined_call_operand.hbm [shape: f32[16,128], index: 2, kind: output, shape index: {}]
  %s3 = sld [smem:[#allocation0]]
  $region22: #{tpu_custom_call.1} parent=0
    _
  %s5 = ssub.s32 1, %s3
  %s6 = scalar_select 0, %s5, %s3
  $region1: #{tpu_custom_call.1} parent=0
    #allocation2 [shape = 'u8[16384]{0}', space=vmem, size = 0x4000, scoped, tag = 'input window, operand 1, single buffered']
    #allocation3 [shape = 's32[1]{0}', space=sflag, size = 0x4, scoped, tag = 'scoped memory for tpu_custom_call.1']
    #allocation4 [shape = 's32[1]{0}', space=sflag, size = 0x4, scoped, tag = 'scoped memory for tpu_custom_call.1']
    #allocation5 [shape = 'u8[8192]{0}', space=vmem, size = 0x2000, scoped, tag = 'output window, operand 0, single buffered']
    %7 = vsyncpa [#allocation3], 0
    %8 = vsyncpa [#allocation4], 0
    // Predicated region
    $region2: #{tpu_custom_call.1} parent=1 // pred_check
      _
    $region3: #{tpu_custom_call.1} parent=1 // pred_check_branch
      %10 = sbr.rel (0) target = $region5
    $region4: #{tpu_custom_call.1} parent=1 // pred_region
      _
    $region5: #{tpu_custom_call.1} parent=1 // pred_fallthru
      _
    // Predicated region
    $region6: #{tpu_custom_call.1} parent=1 // pred_check
      _
    $region7: #{tpu_custom_call.1} parent=1 // pred_check_branch
      %12 = sbr.rel (0) target = $region9
    $region8: #{tpu_custom_call.1} parent=1 // pred_region
      %s14 = ssub.s32 512, 512
      %15 = vsyncadd [#allocation3], %s14
      %s16 = sshll.u32 [#allocation2], 4
      %s17 = int_to_ptr.vmem [resolvable:$true] %s16
      %22 = dma.hbm_to_vmem [thread:$0]  %s1, 512, %s17, [#allocation3], 128, 128, 8
    $region9: #{tpu_custom_call.1} parent=1 // pred_fallthru
      _
    // Predicated region
    $region10: #{tpu_custom_call.1} parent=1 // pred_check
      _
    $region11: #{tpu_custom_call.1} parent=1 // pred_check_branch
      %24 = sbr.rel (0) target = $region13
    $region12: #{tpu_custom_call.1} parent=1 // pred_region
      %25 = dma.done [#allocation3], 512
    $region13: #{tpu_custom_call.1} parent=1 // pred_fallthru
      _
    %v26 = vld [vmem:[%s0] sm:$0xff]
    %v27 = vld [vmem:[%s0 + $0x8] sm:$0xff]
    %v28 = vlaneseq
    %v29 = vand.u32 %v28, 127
    %30 = vset.pattern.permute.xlu0 0
    %31 = vperm.xlu0 %30, %v26
    %v32 = vpop.permute.xlu0 %31
    %33 = vset.pattern.permute.xlu0 0
    %34 = vperm.xlu0 %33, %v27
    %v35 = vpop.permute.xlu0 %34
    %vm36 = vcmp.eq.s32.totalorder %v32, %v29
    %vm37 = vcmp.eq.s32.totalorder %v35, %v29
    %v38 = vsel %vm36, 1, 0
    %v39 = vsel %vm37, 1, 0
    %v40 = vcvt.s32.f32 %v38
    %v41 = vcvt.s32.f32 %v39
    %v42 = vld [vmem:[#allocation2] sm:$0xff]
    %v43 = vld [vmem:[#allocation2 + $0x8] sm:$0xff]
    %v44 = vld [vmem:[#allocation2 + $0x10] sm:$0xff]
    %v45 = vld [vmem:[#allocation2 + $0x18] sm:$0xff]
    %vm46 = vcmask 261120
    %v48 = vsel %vm46, %v40, 0
    %v51 = vsel %vm46, %v41, 0
    %53 = vmatprep.subr.mxu0 0.0
    %54 = vmatpush1.msra.mxu0 %v42
    %55 = vmatprep.subr.mxu0 0.0
    %56 = vmatpush1.msra.mxu0 %v43
    %57 = vmatprep.subr.mxu0 0.0
    %58 = vmatpush1.msra.mxu0 %v44
    %59 = vmatprep.subr.mxu0 0.0
    %60 = vmatpush1.msra.mxu0 %v45
    %61 = vmatprep.subr.mxu0 0.0
    %62 = vmatpush1.msra.mxu0 0.0
    %63 = vmatprep.subr.mxu0 0.0
    %64 = vmatpush1.msra.mxu0 0.0
    %65 = vmatprep.subr.mxu0 0.0
    %66 = vmatpush1.msra.mxu0 0.0
    %67 = vmatprep.subr.mxu0 0.0
    %68 = vmatpush1.msra.mxu0 0.0
    %69 = vmatprep.subr.mxu0 0.0
    %70 = vmatpush1.msra.mxu0 0.0
    %71 = vmatprep.subr.mxu0 0.0
    %72 = vmatpush1.msra.mxu0 0.0
    %73 = vmatprep.subr.mxu0 0.0
    %74 = vmatpush1.msra.mxu0 0.0
    %75 = vmatprep.subr.mxu0 0.0
    %76 = vmatpush1.msra.mxu0 0.0
    %77 = vmatprep.subr.mxu0 0.0
    %78 = vmatpush1.msra.mxu0 0.0
    %79 = vmatprep.subr.mxu0 0.0
    %80 = vmatpush1.msra.mxu0 0.0
    %81 = vmatprep.subr.mxu0 0.0
    %82 = vmatpush1.msra.mxu0 0.0
    %83 = vmatprep.subr.mxu0 0.0
    %84 = vmatpush1.msra.mxu0 0.0
    %85 = vmatprep.subr.mxu0 0.0
    %86 = vmatpush1.msra.mxu0 0.0
    %87 = vmatprep.subr.mxu0 0.0
    %88 = vmatpush1.msra.mxu0 0.0
    %89 = vmatprep.subr.mxu0 0.0
    %90 = vmatpush1.msra.mxu0 0.0
    %91 = vmatprep.subr.mxu0 0.0
    %92 = vmatpush1.msra.mxu0 0.0
    %93 = vmatprep.subr.mxu0 0.0
    %94 = vmatpush1.msra.mxu0 0.0
    %95 = vmatprep.subr.mxu0 0.0
    %96 = vmatpush1.msra.mxu0 0.0
    %97 = vmatprep.subr.mxu0 0.0
    %98 = vmatpush1.msra.mxu0 0.0
    %99 = vmatprep.subr.mxu0 0.0
    %100 = vmatpush1.msra.mxu0 0.0
    %101 = vmatprep.subr.mxu0 0.0
    %102 = vmatpush1.msra.mxu0 0.0
    %103 = vmatprep.subr.mxu0 0.0
    %104 = vmatpush1.msra.mxu0 0.0
    %105 = vmatprep.subr.mxu0 0.0
    %106 = vmatpush1.msra.mxu0 0.0
    %107 = vmatprep.subr.mxu0 0.0
    %108 = vmatpush1.msra.mxu0 0.0
    %109 = vmatprep.subr.mxu0 0.0
    %110 = vmatpush1.msra.mxu0 0.0
    %111 = vmatprep.subr.mxu0 0.0
    %112 = vmatpush1.msra.mxu0 0.0
    %113 = vmatprep.subr.mxu0 0.0
    %114 = vmatpush1.msra.mxu0 0.0
    %115 = vmatprep.subr.mxu0 0.0
    %116 = vmatpush1.msra.mxu0 0.0
    %117 = vmatprep.mubr.f32.mxu0 0.0
    %118 = vmatmul.mubr.f32.gmra.mrb[0].mxu0 %v48
    %v119 = vpop.f32.mrb[0].mxu0
    %v120 = vadd.f32 0.0, %v119
    %v121 = vpop.f32.mrb[0].mxu0
    %122 = vmatprep.mubr.f32.mxu0 0.0
    %123 = vmatmul.mubr.f32.gmra.mrb[0].mxu0 %v51
    %v124 = vpop.f32.mrb[0].mxu0
    %v125 = vadd.f32 0.0, %v124
    %v126 = vpop.f32.mrb[0].mxu0
    %127 = vdwg.mxu0
    %128 = vst [vmem:[#allocation5] sm:$0xff] %v120
    %129 = vst [vmem:[#allocation5 + $0x8] sm:$0xff] %v125
    // Predicated region
    $region14: #{tpu_custom_call.1} parent=1 // pred_check
      _
    $region15: #{tpu_custom_call.1} parent=1 // pred_check_branch
      %131 = sbr.rel (0) target = $region17
    $region16: #{tpu_custom_call.1} parent=1 // pred_region
      %s133 = ssub.s32 256, 256
      %134 = vsyncadd [#allocation4], %s133
      %s135 = sshll.u32 [#allocation5], 4
      %s136 = int_to_ptr.vmem [resolvable:$true] %s135
      %141 = dma.vmem_to_hbm [thread:$0]  %s136, 256, %s2, [#allocation4], 128, 128, 8
    $region17: #{tpu_custom_call.1} parent=1 // pred_fallthru
      _
    // Predicated region
    $region18: #{tpu_custom_call.1} parent=1 // pred_check
      _
    $region19: #{tpu_custom_call.1} parent=1 // pred_check_branch
      %143 = sbr.rel (0) target = $region21
    $region20: #{tpu_custom_call.1} parent=1 // pred_region
      %144 = dma.done [#allocation4], 256
    $region21: #{tpu_custom_call.1} parent=1 // pred_fallthru
      _
    %145 = vsyncpa [#allocation3], 1
    %146 = vsyncpa [#allocation4], 1

</llo_original>
